<compile_context>
chip_gen: v7x
topology: tpu7x:2x2x1
jax: 0.10.0
libtpu: 0.0.40
codegen_flags: <defaults>
</compile_context>

<pallas_src>
import math

import jax
import jax.numpy as jnp
from jax.experimental import pallas as pl
from jax.experimental.pallas import tpu as pltpu


def _cheb_clenshaw_kernel(gso_t_ref, bias_ref, y_ref, o_ref):
    """One grid step = one (batch, time-tile) slab.

    gso_t_ref : (N, N)             gso^T (resident every step)
    bias_ref  : (M, 1)             bias repeated over the time tile, M = c_out*TT
    y_ref     : (1, 1, Ks, M, N)   Y_k = X @ W_k for this slab (row m = (j, t'))
    o_ref     : (1, 1, M, N)       output slab
    """
    Ks = y_ref.shape[2]
    gso_t = gso_t_ref[...]                      # (N, N)

    def load_y(k):
        return y_ref[0, 0, k].astype(jnp.float32)      # (M, N)

    def shift(v):
        # Right-multiply by gso^T == apply gso along the vertex (lane) axis.
        return jnp.dot(v, gso_t, preferred_element_type=jnp.float32)

    # Clenshaw backward recurrence for  sum_k T_k(gso) . Y_k :
    #   B_k = Y_k + 2*gso.B_{k+1} - B_{k+2},   out = Y_0 + gso.B_1 - B_2
    # (identical result to the module's forward Chebyshev recursion).
    b1 = None   # B_{k+1}
    b2 = None   # B_{k+2}
    for k in range(Ks - 1, 0, -1):
        t = load_y(k)
        if b1 is not None:
            t = t + 2.0 * shift(b1)
        if b2 is not None:
            t = t - b2
        b1, b2 = t, b1

    out = load_y(0)
    if b1 is not None:
        out = out + shift(b1)
    if b2 is not None:
        out = out - b2

    o_ref[0, 0] = (out + bias_ref[...]).astype(o_ref.dtype)


def _choose_time_tile(T, Ks, c_out, N, budget_bytes=8 * 2**20):
    """Largest divisor of T whose double-buffered y/out blocks fit the budget."""
    for tt in range(T, 0, -1):
        if T % tt:
            continue
        if 2 * (Ks + 1) * c_out * tt * N * 4 <= budget_bytes:
            return tt
    return 1


def cheb_graph_conv(x_nchw, gso, weight, bias=None, *, time_tile=None):
    """Pallas implementation of ChebGraphConv.forward.

    x_nchw : (B, c_in, T, N)   float32   (same NCHW layout the module receives)
    gso    : (N, N)            float32
    weight : (Ks, c_in, c_out) float32
    bias   : (c_out,)          float32 or None

    Returns: (B, T, N, c_out) float32  (same as the PyTorch module output)
    """
    B, c_in, T, N = x_nchw.shape
    Ks, c_in_w, c_out = weight.shape
    assert c_in_w == c_in
    assert Ks >= 1, "Ks must be a positive integer"
    if bias is None:
        bias = jnp.zeros((c_out,), x_nchw.dtype)

    tt = time_tile if time_tile is not None else _choose_time_tile(T, Ks, c_out, N)
    assert T % tt == 0, "time_tile must divide T"
    nt = T // tt
    M = c_out * tt

    # Fused weight projection (all Ks orders in one dense contraction over c_in),
    # consumed directly from the NCHW input - no channels-last transpose of x.
    y = jnp.einsum('kij,bitn->bkjtn', weight, x_nchw)       # (B, Ks, c_out, T, N)
    # Pre-block for the kernel: rows m = (j, t'), vertices N on the lane axis.
    y = y.reshape(B, Ks, c_out, nt, tt, N)
    y = jnp.transpose(y, (0, 3, 1, 2, 4, 5))                # (B, nt, Ks, c_out, tt, N)
    y = y.reshape(B, nt, Ks, M, N)

    bias_col = jnp.repeat(bias.astype(jnp.float32), tt)[:, None]   # (M, 1), bias[m//tt]
    gso_t = jnp.transpose(gso).astype(jnp.float32)                 # (N, N)

    # VMEM budget: double-buffered y/out blocks + resident gso/bias + live slabs.
    y_blk = Ks * M * N * 4
    o_blk = M * N * 4
    vmem_est = 2 * (y_blk + o_blk) + 2 * N * N * 4 + 6 * o_blk + (1 << 20)
    vmem_limit = int(min(max(vmem_est, 32 * 2**20), 64 * 2**20))
    # Note: for very large graphs (N >= ~2000) the resident gso double-buffer
    # becomes the dominant VMEM consumer (2*N*N*4); single-buffering it via
    # pipeline_mode=pl.Buffered(1) and/or tiling N would be the next step.

    out_blocked = pl.pallas_call(
        _cheb_clenshaw_kernel,
        out_shape=jax.ShapeDtypeStruct((B, nt, M, N), x_nchw.dtype),
        grid_spec=pltpu.PrefetchScalarGridSpec(
            num_scalar_prefetch=0,
            grid=(B, nt),
            in_specs=[
                pl.BlockSpec((N, N), lambda b, t: (0, 0)),              # gso^T (resident)
                pl.BlockSpec((M, 1), lambda b, t: (0, 0)),              # bias column
                pl.BlockSpec((1, 1, Ks, M, N), lambda b, t: (b, t, 0, 0, 0)),  # Y slab
            ],
            out_specs=pl.BlockSpec((1, 1, M, N), lambda b, t: (b, t, 0, 0)),
        ),
        compiler_params=pltpu.CompilerParams(
            dimension_semantics=("parallel", "parallel"),
            vmem_limit_bytes=vmem_limit,
        ),
    )(gso_t, bias_col, y)

    # Un-block: (B, nt, c_out*tt, N) -> (B, T, N, c_out)  (module's output layout).
    out = out_blocked.reshape(B, nt, c_out, tt, N)
    out = jnp.transpose(out, (0, 1, 3, 4, 2)).reshape(B, T, N, c_out)
    return out


def cheb_graph_conv_ref(x_nchw, gso, weight, bias):
    """Pure-JAX reference mirroring the PyTorch einsum semantics exactly."""
    x = jnp.transpose(x_nchw, (0, 2, 3, 1))          # (B, T, N, c_in)
    Ks = weight.shape[0]
    x_list = [x]
    if Ks >= 2:
        x_list.append(jnp.einsum('hi,btij->bthj', gso, x))
        for k in range(2, Ks):
            x_list.append(jnp.einsum('hi,btij->bthj', 2.0 * gso, x_list[k - 1])
                          - x_list[k - 2])
    xs = jnp.stack(x_list, axis=2)                   # (B, T, Ks, N, c_in)
    out = jnp.einsum('btkhi,kij->bthj', xs, weight)  # (B, T, N, c_out)
    return out + bias


if __name__ == "__main__":
    # Small shapes consistent with the module: NCHW = (B, c_in, T, n_vertex)
    B, c_in, T, N = 2, 4, 8, 16
    Ks, c_out = 3, 8

    key = jax.random.PRNGKey(0)
    kx, kg, kw, kb = jax.random.split(key, 4)

    x = jax.random.normal(kx, (B, c_in, T, N), dtype=jnp.float32)

    # Symmetric, roughly-normalized graph shift operator (deterministic).
    a = jax.random.uniform(kg, (N, N), dtype=jnp.float32)
    gso = (a + a.T) / (2.0 * N)

    # Deterministic parameter init (shapes from __init__: weight (Ks, c_in, c_out),
    # bias (c_out,)); mimics kaiming_uniform / fan_in-uniform bounds.
    fan_in = c_in * c_out
    w_bound = math.sqrt(6.0 / ((1.0 + 5.0) * fan_in))   # kaiming_uniform, a=sqrt(5)
    weight = jax.random.uniform(kw, (Ks, c_in, c_out), dtype=jnp.float32,
                                minval=-w_bound, maxval=w_bound)
    b_bound = 1.0 / math.sqrt(fan_in)
    bias = jax.random.uniform(kb, (c_out,), dtype=jnp.float32,
                              minval=-b_bound, maxval=b_bound)

    fn = jax.jit(cheb_graph_conv)
    out = jax.block_until_ready(fn(x, gso, weight, bias))
    ref = jax.block_until_ready(cheb_graph_conv_ref(x, gso, weight, bias))

    assert out.shape == (B, T, N, c_out)
    assert jnp.allclose(out, ref, atol=1e-4, rtol=1e-4), "mismatch vs reference"
    print("KERNEL_OK")
</pallas_src>

<mosaic_0001>
module attributes {stable_mosaic.version = 11 : i64} {
  func.func @_cheb_clenshaw_kernel(%arg0: i32, %arg1: i32, %arg2: memref<16x16xf32, #tpu.memory_space<vmem>>, %arg3: memref<64x1xf32, #tpu.memory_space<vmem>>, %arg4: memref<1x1x3x64x16xf32, #tpu.memory_space<vmem>>, %arg5: memref<1x1x64x16xf32, #tpu.memory_space<vmem>>) attributes {dimension_semantics = [#tpu.dimension_semantics<parallel>, #tpu.dimension_semantics<parallel>], iteration_bounds = array<i64: 2, 1>, scalar_prefetch = 0 : i64, scratch_operands = 0 : i64, tpu.core_type = #tpu.core_type<tc>, window_params = [{pipeline_mode = #tpu.pipeline_mode<synchronous>, transform_indices = @transform_0, window_bounds = array<i64: 16, 16>}, {pipeline_mode = #tpu.pipeline_mode<synchronous>, transform_indices = @transform_1, window_bounds = array<i64: 64, 1>}, {transform_indices = @transform_2, window_bounds = array<i64: 1, 1, 3, 64, 16>}, {transform_indices = @transform_3, window_bounds = array<i64: 1, 1, 64, 16>}]} {
    %c0 = arith.constant 0 : index
    %c0_0 = arith.constant 0 : index
    %0 = vector.load %arg2[%c0, %c0_0] : memref<16x16xf32, #tpu.memory_space<vmem>>, vector<16x16xf32>
    %c0_1 = arith.constant 0 : index
    %c0_2 = arith.constant 0 : index
    %c2 = arith.constant 2 : index
    %c0_3 = arith.constant 0 : index
    %c0_4 = arith.constant 0 : index
    %1 = vector.load %arg4[%c0_1, %c0_2, %c2, %c0_3, %c0_4] : memref<1x1x3x64x16xf32, #tpu.memory_space<vmem>>, vector<1x1x1x64x16xf32>
    %2 = vector.shape_cast %1 : vector<1x1x1x64x16xf32> to vector<64x16xf32>
    %c0_5 = arith.constant 0 : index
    %c0_6 = arith.constant 0 : index
    %c1 = arith.constant 1 : index
    %c0_7 = arith.constant 0 : index
    %c0_8 = arith.constant 0 : index
    %3 = vector.load %arg4[%c0_5, %c0_6, %c1, %c0_7, %c0_8] : memref<1x1x3x64x16xf32, #tpu.memory_space<vmem>>, vector<1x1x1x64x16xf32>
    %4 = vector.shape_cast %3 : vector<1x1x1x64x16xf32> to vector<64x16xf32>
    %cst = arith.constant dense<0.000000e+00> : vector<64x16xf32>
    %5 = tpu.matmul %2, %0, %cst {dimension_numbers = #tpu.dot_dimension_numbers<[1], [0], [0], [1], [0, 0, 1, 1], [], []>} : vector<64x16xf32>, vector<16x16xf32>, vector<64x16xf32> -> vector<64x16xf32>
    %cst_9 = arith.constant 2.000000e+00 : f32
    %6 = vector.broadcast %cst_9 : f32 to vector<64x16xf32>
    %7 = arith.mulf %6, %5 : vector<64x16xf32>
    %8 = arith.addf %4, %7 : vector<64x16xf32>
    %c0_10 = arith.constant 0 : index
    %c0_11 = arith.constant 0 : index
    %c0_12 = arith.constant 0 : index
    %c0_13 = arith.constant 0 : index
    %c0_14 = arith.constant 0 : index
    %9 = vector.load %arg4[%c0_10, %c0_11, %c0_12, %c0_13, %c0_14] : memref<1x1x3x64x16xf32, #tpu.memory_space<vmem>>, vector<1x1x1x64x16xf32>
    %10 = vector.shape_cast %9 : vector<1x1x1x64x16xf32> to vector<64x16xf32>
    %cst_15 = arith.constant dense<0.000000e+00> : vector<64x16xf32>
    %11 = tpu.matmul %8, %0, %cst_15 {dimension_numbers = #tpu.dot_dimension_numbers<[1], [0], [0], [1], [0, 0, 1, 1], [], []>} : vector<64x16xf32>, vector<16x16xf32>, vector<64x16xf32> -> vector<64x16xf32>
    %12 = arith.addf %10, %11 : vector<64x16xf32>
    %13 = arith.subf %12, %2 : vector<64x16xf32>
    %c0_16 = arith.constant 0 : index
    %c0_17 = arith.constant 0 : index
    %14 = vector.load %arg3[%c0_16, %c0_17] : memref<64x1xf32, #tpu.memory_space<vmem>>, vector<64x1xf32>
    %15 = vector.broadcast %14 : vector<64x1xf32> to vector<64x16xf32>
    %16 = arith.addf %13, %15 : vector<64x16xf32>
    %c0_18 = arith.constant 0 : index
    %c0_19 = arith.constant 0 : index
    %c0_20 = arith.constant 0 : index
    %c0_21 = arith.constant 0 : index
    %17 = vector.load %arg5[%c0_18, %c0_19, %c0_20, %c0_21] : memref<1x1x64x16xf32, #tpu.memory_space<vmem>>, vector<1x1x64x16xf32>
    %18 = vector.shape_cast %17 : vector<1x1x64x16xf32> to vector<64x16xf32>
    %19 = vector.shape_cast %16 : vector<64x16xf32> to vector<1x1x64x16xf32>
    tpu.vector_store %arg5[%c0_18, %c0_19, %c0_20, %c0_21], %19 {strides = array<i32>} : memref<1x1x64x16xf32, #tpu.memory_space<vmem>>, vector<1x1x64x16xf32>,
    return
  }
  func.func @transform_0(%arg0: i32, %arg1: i32) -> (i32, i32) {
    %c0_i32 = arith.constant 0 : i32
    %c0_i32_0 = arith.constant 0 : i32
    %c0_i32_1 = arith.constant 0 : i32
    return %c0_i32, %c0_i32_0 : i32, i32
  }
  func.func @transform_1(%arg0: i32, %arg1: i32) -> (i32, i32) {
    %c0_i32 = arith.constant 0 : i32
    %c0_i32_0 = arith.constant 0 : i32
    %c0_i32_1 = arith.constant 0 : i32
    return %c0_i32, %c0_i32_0 : i32, i32
  }
  func.func @transform_2(%arg0: i32, %arg1: i32) -> (i32, i32, i32, i32, i32) {
    %c0_i32 = arith.constant 0 : i32
    %c0_i32_0 = arith.constant 0 : i32
    %c0_i32_1 = arith.constant 0 : i32
    %c0_i32_2 = arith.constant 0 : i32
    return %arg0, %arg1, %c0_i32, %c0_i32_0, %c0_i32_1 : i32, i32, i32, i32, i32
  }
  func.func @transform_3(%arg0: i32, %arg1: i32) -> (i32, i32, i32, i32) {
    %c0_i32 = arith.constant 0 : i32
    %c0_i32_0 = arith.constant 0 : i32
    %c0_i32_1 = arith.constant 0 : i32
    return %arg0, %arg1, %c0_i32, %c0_i32_0 : i32, i32, i32, i32
  }
}

</mosaic_0001>

<llo_original>
// kernel: cheb_graph_conv.1
$region0: #{cheb_graph_conv.1}
  #allocation0 [shape = 'u32[]', space=smem, size = 0x4, offset = 0x4, fixed_abs, tag = 'smem constant byte address 0x4 - core index']
  #allocation1 [shape = 'u32[144,128]{1,0:T(1,128)}', space=vmem, size = 0x12000, scoped, tag = 'internal scratch']
  %s0 = inlined_call_operand.vmem [shape: f32[16,16], index: 0, kind: input, shape index: {}]
  %s1 = inlined_call_operand.vmem [shape: f32[64,1], index: 1, kind: input, shape index: {}]
  %s2 = inlined_call_operand.vmem [shape: f32[2,1,3,64,16], index: 2, kind: input, shape index: {}]
  %s3 = inlined_call_operand.vmem [shape: f32[2,1,64,16], index: 3, kind: output, shape index: {}]
  %s4 = sld [smem:[#allocation0]]
  $region45: #{cheb_graph_conv.1} parent=0
    _
  %s6 = ssub.s32 1, %s4
  %s7 = scalar_select 0, %s6, %s4
  loop: start=0, step=1, limit=4
  $region2: #{cheb_graph_conv.1} parent=0 // loop_pre_header
    _
  $region3: #{cheb_graph_conv.1} parent=0 // loop_header
    %s9 = sphi 0, %s13
    %p10 = scmp.ge.s32.totalorder %s9, 4
    %s16 = sphi 0, %s28
    %s17 = sphi 0, %s24
    %s18 = sphi 0, %s16
    %s19 = sphi 0, %s17
    %s20 = sphi 0, %s18
    %s21 = sphi 0, %s19
    %s29 = sphi 0, %s29
    %s31 = sphi 0, %s29
    %s32 = sphi 0, %s31
    %s46 = sphi 0, %s32
    %s50 = sphi 0, %s50
    %s52 = sphi 0, %s50
    %s53 = sphi 0, %s52
    %s67 = sphi 0, %s53
    %s75 = sphi 0, %s77
    %s78 = sphi 0, %s75
    %s79 = sphi 0, %s78
    %s95 = sphi 0, %s79
    %s103 = sphi 0, %s105
    %s106 = sphi 0, %s103
    %s107 = sphi 0, %s106
    %s123 = sphi 0, %s107
  $region4: #{cheb_graph_conv.1} parent=0 // loop_header_branch
    %12 = sbr.rel (%p10) target = $region8
  $region5: #{cheb_graph_conv.1} parent=0 // loop_body
    %s14 = ssub.s32 %s9, 1
    %s15 = ssub.s32 %s9, 2
    %s22 = sadd.s32 1, %s17
    %p23 = scmp.ge.s32.totalorder %s22, 1
    %s24 = scalar_select %p23, 0, %s22
    %s25 = sadd.s32 1, %s16
    %s26 = scalar_select %p23, %s25, %s16
    %p27 = scmp.ge.s32.totalorder %s26, 2
    %s28 = scalar_select %p27, 0, %s26
    %s30 = sadd.s32 %s29, 1
    %p33 = scmp.eq.s32.totalorder %s9, 1
    %p34 = scmp.ne.s32.totalorder %s29, %s31
    %p35 = scmp.eq.s32.totalorder %s9, 0
    %p36 = por %p34, %p35
    %p37 = scmp.ne.s32.totalorder %s29, %s31
    %p38 = scmp.eq.s32.totalorder %s14, 1
    %p39 = por %p37, %p38
    %p40 = scmp.ne.s32.totalorder %s31, %s32
    %p41 = scmp.eq.s32.totalorder %s14, 0
    %p42 = por %p40, %p41
    %p43 = scmp.ne.s32.totalorder %s31, %s32
    %p44 = scmp.eq.s32.totalorder %s15, 1
    %p45 = por %p43, %p44
    %p47 = scmp.ne.s32.totalorder %s32, %s46
    %p48 = scmp.eq.s32.totalorder %s15, 0
    %p49 = por %p47, %p48
    %s51 = sadd.s32 %s50, 1
    %p54 = scmp.eq.s32.totalorder %s9, 1
    %p55 = scmp.ne.s32.totalorder %s50, %s52
    %p56 = scmp.eq.s32.totalorder %s9, 0
    %p57 = por %p55, %p56
    %p58 = scmp.ne.s32.totalorder %s50, %s52
    %p59 = scmp.eq.s32.totalorder %s14, 1
    %p60 = por %p58, %p59
    %p61 = scmp.ne.s32.totalorder %s52, %s53
    %p62 = scmp.eq.s32.totalorder %s14, 0
    %p63 = por %p61, %p62
    %p64 = scmp.ne.s32.totalorder %s52, %s53
    %p65 = scmp.eq.s32.totalorder %s15, 1
    %p66 = por %p64, %p65
    %p68 = scmp.ne.s32.totalorder %s53, %s67
    %p69 = scmp.eq.s32.totalorder %s15, 0
    %p70 = por %p68, %p69
    %s71 = ssub.s32 %s16, %s28
    %s72 = ssub.s32 %s17, %s24
    %s73 = sor.u32 %s71, %s72
    %p74 = scmp.eq.s32.totalorder %s73, 0
    %s76 = sadd.s32 %s75, 1
    %s77 = scalar_select %p74, %s75, %s76
    %p80 = pneg %p74
    %p81 = scmp.eq.s32.totalorder %s9, 1
    %p82 = por %p80, %p81
    %p83 = scmp.ne.s32.totalorder %s75, %s78
    %p84 = scmp.eq.s32.totalorder %s9, 0
    %p85 = por %p83, %p84
    %p86 = scmp.ne.s32.totalorder %s75, %s78
    %p87 = scmp.eq.s32.totalorder %s14, 1
    %p88 = por %p86, %p87
    %p89 = scmp.ne.s32.totalorder %s78, %s79
    %p90 = scmp.eq.s32.totalorder %s14, 0
    %p91 = por %p89, %p90
    %p92 = scmp.ne.s32.totalorder %s78, %s79
    %p93 = scmp.eq.s32.totalorder %s15, 1
    %p94 = por %p92, %p93
    %p96 = scmp.ne.s32.totalorder %s79, %s95
    %p97 = scmp.eq.s32.totalorder %s15, 0
    %p98 = por %p96, %p97
    %s99 = ssub.s32 %s16, %s28
    %s100 = ssub.s32 %s17, %s24
    %s101 = sor.u32 %s99, %s100
    %p102 = scmp.eq.s32.totalorder %s101, 0
    %s104 = sadd.s32 %s103, 1
    %s105 = scalar_select %p102, %s103, %s104
    %p108 = pneg %p102
    %p109 = scmp.eq.s32.totalorder %s9, 1
    %p110 = por %p108, %p109
    %p111 = scmp.ne.s32.totalorder %s103, %s106
    %p112 = scmp.eq.s32.totalorder %s9, 0
    %p113 = por %p111, %p112
    %p114 = scmp.ne.s32.totalorder %s103, %s106
    %p115 = scmp.eq.s32.totalorder %s14, 1
    %p116 = por %p114, %p115
    %p117 = scmp.ne.s32.totalorder %s106, %s107
    %p118 = scmp.eq.s32.totalorder %s14, 0
    %p119 = por %p117, %p118
    %p120 = scmp.ne.s32.totalorder %s106, %s107
    %p121 = scmp.eq.s32.totalorder %s15, 1
    %p122 = por %p120, %p121
    %p124 = scmp.ne.s32.totalorder %s107, %s123
    %p125 = scmp.eq.s32.totalorder %s15, 0
    %p126 = por %p124, %p125
    %p127 = scmp.le.s32.totalorder 1, %s9
    %p128 = scmp.lt.s32.totalorder %s9, 3
    %p129 = pnand %p127, %p128
    %p130 = pneg %p129
    // Predicated region
    $region9: #{cheb_graph_conv.1} parent=5 // pred_check
      _
    $region10: #{cheb_graph_conv.1} parent=5 // pred_check_branch
      %132 = sbr.rel (%p129) target = $region12
    $region11: #{cheb_graph_conv.1} parent=5 // pred_region
      %s133 = ssub.s32 %s9, 1
      // Predicated region
      $region13: #{cheb_graph_conv.1} parent=11 // pred_check
        %p134 = pneg %p42
      $region14: #{cheb_graph_conv.1} parent=11 // pred_check_branch
        %136 = sbr.rel (%p134) target = $region16
      $region15: #{cheb_graph_conv.1} parent=11 // pred_region
        _
      $region16: #{cheb_graph_conv.1} parent=11 // pred_fallthru
        _
      // Predicated region
      $region17: #{cheb_graph_conv.1} parent=11 // pred_check
        %p137 = pneg %p63
      $region18: #{cheb_graph_conv.1} parent=11 // pred_check_branch
        %139 = sbr.rel (%p137) target = $region20
      $region19: #{cheb_graph_conv.1} parent=11 // pred_region
        _
      $region20: #{cheb_graph_conv.1} parent=11 // pred_fallthru
        _
    $region12: #{cheb_graph_conv.1} parent=5 // pred_fallthru
      _
    %p140 = scmp.lt.s32.totalorder %s9, 2
    // Predicated region
    $region21: #{cheb_graph_conv.1} parent=5 // pred_check
      %p141 = pneg %p140
    $region22: #{cheb_graph_conv.1} parent=5 // pred_check_branch
      %143 = sbr.rel (%p141) target = $region24
    $region23: #{cheb_graph_conv.1} parent=5 // pred_region
      // Predicated region
      $region25: #{cheb_graph_conv.1} parent=23 // pred_check
        %p144 = pneg %p85
      $region26: #{cheb_graph_conv.1} parent=23 // pred_check_branch
        %146 = sbr.rel (%p144) target = $region28
      $region27: #{cheb_graph_conv.1} parent=23 // pred_region
        %p147 = scmp.lt.s32.totalorder %s16, 1
        %s148 = scalar_select %p147, %s16, 1
        %p149 = scmp.lt.s32.totalorder %s17, 0
        %s150 = scalar_select %p149, %s17, 0
        %s151 = smul.addr %s150, 24
        %s152 = smul.addr %s148, 24
        %s153 = sadd.s32 %s151, %s152
        %s154 = smul.addr %s153, 8
        %s155 = scalar_lea.vmem %s2, %s154
      $region28: #{cheb_graph_conv.1} parent=23 // pred_fallthru
        _
    $region24: #{cheb_graph_conv.1} parent=5 // pred_fallthru
      _
    %p156 = scmp.le.s32.totalorder 1, %s9
    %p157 = scmp.lt.s32.totalorder %s9, 3
    %p158 = pnand %p156, %p157
    %p159 = pneg %p158
    // Predicated region
    $region29: #{cheb_graph_conv.1} parent=5 // pred_check
      _
    $region30: #{cheb_graph_conv.1} parent=5 // pred_check_branch
      %161 = sbr.rel (%p158) target = $region32
    $region31: #{cheb_graph_conv.1} parent=5 // pred_region
      %s162 = ssub.s32 %s9, 1
      %p163 = pneg %p42
      %p164 = pneg %p39
      %p165 = pneg %p63
      %p166 = pneg %p60
      %p167 = scmp.lt.s32.totalorder %s18, 1
      %s168 = scalar_select %p167, %s18, 1
      %p169 = scmp.lt.s32.totalorder %s19, 0
      %s170 = scalar_select %p169, %s19, 0
      %s171 = smul.addr %s170, 24
      %s172 = smul.addr %s168, 24
      %s173 = sadd.s32 %s171, %s172
      %s174 = smul.addr %s173, 8
      %s175 = scalar_lea.vmem %s2, %s174
      %p176 = pneg %p91
      %p177 = pneg %p88
      %p178 = pneg %p119
      %p179 = pneg %p116
      %p180 = scmp.lt.s32.totalorder %s18, 1
      %s181 = scalar_select %p180, %s18, 1
      %p182 = scmp.lt.s32.totalorder %s19, 0
      %s183 = scalar_select %p182, %s19, 0
      %s184 = smul.addr %s183, 8
      %s185 = smul.addr %s181, 8
      %s186 = sadd.s32 %s184, %s185
      %s187 = smul.addr %s186, 8
      %s188 = scalar_lea.vmem %s3, %s187
      %p189 = scmp.lt.s32.totalorder %s18, 1
      %s190 = scalar_select %p189, %s18, 1
      %p191 = scmp.lt.s32.totalorder %s19, 0
      %s192 = scalar_select %p191, %s19, 0
      %s193 = smul.addr %s192, 24
      %s194 = smul.addr %s190, 24
      %s195 = sadd.s32 %s193, %s194
      %s196 = smul.addr %s195, 8
      %s197 = scalar_lea.vmem %s2, %s196
      %p198 = scmp.lt.s32.totalorder %s18, 1
      %s199 = scalar_select %p198, %s18, 1
      %p200 = scmp.lt.s32.totalorder %s19, 0
      %s201 = scalar_select %p200, %s19, 0
      %s202 = smul.addr %s201, 8
      %s203 = smul.addr %s199, 8
      %s204 = sadd.s32 %s202, %s203
      %s205 = smul.addr %s204, 8
      %s206 = scalar_lea.vmem %s3, %s205
      %v207 = vld [vmem:[%s0] sm:$0xff]
      %v208 = vld [vmem:[%s0 + $0x8] sm:$0xff]
      %s209 = scalar_lea.vmem %s197, 128
      %v210 = vld [vmem:[%s209] sm:$0xff]
      %v211 = vld [vmem:[%s209 + $0x8] sm:$0xff]
      %v212 = vld [vmem:[%s209 + $0x10] sm:$0xff]
      %v213 = vld [vmem:[%s209 + $0x18] sm:$0xff]
      %v214 = vld [vmem:[%s209 + $0x20] sm:$0xff]
      %v215 = vld [vmem:[%s209 + $0x28] sm:$0xff]
      %v216 = vld [vmem:[%s209 + $0x30] sm:$0xff]
      %v217 = vld [vmem:[%s209 + $0x38] sm:$0xff]
      %s218 = scalar_lea.vmem %s197, 64
      %v219 = vld [vmem:[%s218] sm:$0xff]
      %v220 = vld [vmem:[%s218 + $0x8] sm:$0xff]
      %v221 = vld [vmem:[%s218 + $0x10] sm:$0xff]
      %v222 = vld [vmem:[%s218 + $0x18] sm:$0xff]
      %v223 = vld [vmem:[%s218 + $0x20] sm:$0xff]
      %v224 = vld [vmem:[%s218 + $0x28] sm:$0xff]
      %v225 = vld [vmem:[%s218 + $0x30] sm:$0xff]
      %v226 = vld [vmem:[%s218 + $0x38] sm:$0xff]
      %vm227 = vcmask 130048
      %v229 = vsel %vm227, %v210, 0
      %v232 = vsel %vm227, %v211, 0
      %v235 = vsel %vm227, %v212, 0
      %v238 = vsel %vm227, %v213, 0
      %v241 = vsel %vm227, %v214, 0
      %v244 = vsel %vm227, %v215, 0
      %v247 = vsel %vm227, %v216, 0
      %v250 = vsel %vm227, %v217, 0
      %252 = vmatprep.subr.mxu0 0.0
      %253 = vmatpush1.msra.mxu0 %v207
      %254 = vmatprep.subr.mxu0 0.0
      %255 = vmatpush1.msra.mxu0 %v208
      %256 = vmatprep.subr.mxu0 0.0
      %257 = vmatpush1.msra.mxu0 0.0
      %258 = vmatprep.subr.mxu0 0.0
      %259 = vmatpush1.msra.mxu0 0.0
      %260 = vmatprep.subr.mxu0 0.0
      %261 = vmatpush1.msra.mxu0 0.0
      %262 = vmatprep.subr.mxu0 0.0
      %263 = vmatpush1.msra.mxu0 0.0
      %264 = vmatprep.subr.mxu0 0.0
      %265 = vmatpush1.msra.mxu0 0.0
      %266 = vmatprep.subr.mxu0 0.0
      %267 = vmatpush1.msra.mxu0 0.0
      %268 = vmatprep.subr.mxu0 0.0
      %269 = vmatpush1.msra.mxu0 0.0
      %270 = vmatprep.subr.mxu0 0.0
      %271 = vmatpush1.msra.mxu0 0.0
      %272 = vmatprep.subr.mxu0 0.0
      %273 = vmatpush1.msra.mxu0 0.0
      %274 = vmatprep.subr.mxu0 0.0
      %275 = vmatpush1.msra.mxu0 0.0
      %276 = vmatprep.subr.mxu0 0.0
      %277 = vmatpush1.msra.mxu0 0.0
      %278 = vmatprep.subr.mxu0 0.0
      %279 = vmatpush1.msra.mxu0 0.0
      %280 = vmatprep.subr.mxu0 0.0
      %281 = vmatpush1.msra.mxu0 0.0
      %282 = vmatprep.subr.mxu0 0.0
      %283 = vmatpush1.msra.mxu0 0.0
      %284 = vmatprep.subr.mxu0 0.0
      %285 = vmatpush1.msra.mxu0 0.0
      %286 = vmatprep.subr.mxu0 0.0
      %287 = vmatpush1.msra.mxu0 0.0
      %288 = vmatprep.subr.mxu0 0.0
      %289 = vmatpush1.msra.mxu0 0.0
      %290 = vmatprep.subr.mxu0 0.0
      %291 = vmatpush1.msra.mxu0 0.0
      %292 = vmatprep.subr.mxu0 0.0
      %293 = vmatpush1.msra.mxu0 0.0
      %294 = vmatprep.subr.mxu0 0.0
      %295 = vmatpush1.msra.mxu0 0.0
      %296 = vmatprep.subr.mxu0 0.0
      %297 = vmatpush1.msra.mxu0 0.0
      %298 = vmatprep.subr.mxu0 0.0
      %299 = vmatpush1.msra.mxu0 0.0
      %300 = vmatprep.subr.mxu0 0.0
      %301 = vmatpush1.msra.mxu0 0.0
      %302 = vmatprep.subr.mxu0 0.0
      %303 = vmatpush1.msra.mxu0 0.0
      %304 = vmatprep.subr.mxu0 0.0
      %305 = vmatpush1.msra.mxu0 0.0
      %306 = vmatprep.subr.mxu0 0.0
      %307 = vmatpush1.msra.mxu0 0.0
      %308 = vmatprep.subr.mxu0 0.0
      %309 = vmatpush1.msra.mxu0 0.0
      %310 = vmatprep.subr.mxu0 0.0
      %311 = vmatpush1.msra.mxu0 0.0
      %312 = vmatprep.subr.mxu0 0.0
      %313 = vmatpush1.msra.mxu0 0.0
      %314 = vmatprep.subr.mxu0 0.0
      %315 = vmatpush1.msra.mxu0 0.0
      %316 = vmatprep.mubr.f32.mxu0 0.0
      %317 = vmatmul.mubr.f32.gmra.mrb[0].mxu0 %v229
      %v318 = vpop.f32.mrb[0].mxu0
      %v319 = vadd.f32 0.0, %v318
      %v320 = vpop.f32.mrb[0].mxu0
      %321 = vmatprep.mubr.f32.mxu0 0.0
      %322 = vmatmul.mubr.f32.gmra.mrb[0].mxu0 %v232
      %v323 = vpop.f32.mrb[0].mxu0
      %v324 = vadd.f32 0.0, %v323
      %v325 = vpop.f32.mrb[0].mxu0
      %326 = vmatprep.mubr.f32.mxu0 0.0
      %327 = vmatmul.mubr.f32.gmra.mrb[0].mxu0 %v235
      %v328 = vpop.f32.mrb[0].mxu0
      %v329 = vadd.f32 0.0, %v328
      %v330 = vpop.f32.mrb[0].mxu0
      %331 = vmatprep.mubr.f32.mxu0 0.0
      %332 = vmatmul.mubr.f32.gmra.mrb[0].mxu0 %v238
      %v333 = vpop.f32.mrb[0].mxu0
      %v334 = vadd.f32 0.0, %v333
      %v335 = vpop.f32.mrb[0].mxu0
      %336 = vmatprep.mubr.f32.mxu0 0.0
      %337 = vmatmul.mubr.f32.gmra.mrb[0].mxu0 %v241
      %v338 = vpop.f32.mrb[0].mxu0
      %v339 = vadd.f32 0.0, %v338
      %v340 = vpop.f32.mrb[0].mxu0
      %341 = vmatprep.mubr.f32.mxu0 0.0
      %342 = vmatmul.mubr.f32.gmra.mrb[0].mxu0 %v244
      %v343 = vpop.f32.mrb[0].mxu0
      %v344 = vadd.f32 0.0, %v343
      %v345 = vpop.f32.mrb[0].mxu0
      %346 = vmatprep.mubr.f32.mxu0 0.0
      %347 = vmatmul.mubr.f32.gmra.mrb[0].mxu0 %v247
      %v348 = vpop.f32.mrb[0].mxu0
      %v349 = vadd.f32 0.0, %v348
      %v350 = vpop.f32.mrb[0].mxu0
      %351 = vmatprep.mubr.f32.mxu0 0.0
      %352 = vmatmul.mubr.f32.gmra.mrb[0].mxu0 %v250
      %v353 = vpop.f32.mrb[0].mxu0
      %v354 = vadd.f32 0.0, %v353
      %v355 = vpop.f32.mrb[0].mxu0
      %356 = vdwg.mxu0
      %v357 = vmul.f32 %v319, 2.0
      %v358 = vmul.f32 %v324, 2.0
      %v359 = vmul.f32 %v329, 2.0
      %v360 = vmul.f32 %v334, 2.0
      %v361 = vmul.f32 %v339, 2.0
      %v362 = vmul.f32 %v344, 2.0
      %v363 = vmul.f32 %v349, 2.0
      %v364 = vmul.f32 %v354, 2.0
      %v365 = vadd.f32 %v219, %v357
      %v366 = vadd.f32 %v220, %v358
      %v367 = vadd.f32 %v221, %v359
      %v368 = vadd.f32 %v222, %v360
      %v369 = vadd.f32 %v223, %v361
      %v370 = vadd.f32 %v224, %v362
      %v371 = vadd.f32 %v225, %v363
      %v372 = vadd.f32 %v226, %v364
      %v373 = vld [vmem:[%s197] sm:$0xff]
      %v374 = vld [vmem:[%s197 + $0x8] sm:$0xff]
      %v375 = vld [vmem:[%s197 + $0x10] sm:$0xff]
      %v376 = vld [vmem:[%s197 + $0x18] sm:$0xff]
      %v377 = vld [vmem:[%s197 + $0x20] sm:$0xff]
      %v378 = vld [vmem:[%s197 + $0x28] sm:$0xff]
      %v379 = vld [vmem:[%s197 + $0x30] sm:$0xff]
      %v380 = vld [vmem:[%s197 + $0x38] sm:$0xff]
      %v382 = vsel %vm227, %v365, 0
      %v385 = vsel %vm227, %v366, 0
      %v388 = vsel %vm227, %v367, 0
      %v391 = vsel %vm227, %v368, 0
      %v394 = vsel %vm227, %v369, 0
      %v397 = vsel %vm227, %v370, 0
      %v400 = vsel %vm227, %v371, 0
      %v403 = vsel %vm227, %v372, 0
      %405 = vmatprep.subr.mxu0 0.0
      %406 = vmatpush1.msra.mxu0 %v207
      %407 = vmatprep.subr.mxu0 0.0
      %408 = vmatpush1.msra.mxu0 %v208
      %409 = vmatprep.subr.mxu0 0.0
      %410 = vmatpush1.msra.mxu0 0.0
      %411 = vmatprep.subr.mxu0 0.0
      %412 = vmatpush1.msra.mxu0 0.0
      %413 = vmatprep.subr.mxu0 0.0
      %414 = vmatpush1.msra.mxu0 0.0
      %415 = vmatprep.subr.mxu0 0.0
      %416 = vmatpush1.msra.mxu0 0.0
      %417 = vmatprep.subr.mxu0 0.0
      %418 = vmatpush1.msra.mxu0 0.0
      %419 = vmatprep.subr.mxu0 0.0
      %420 = vmatpush1.msra.mxu0 0.0
      %421 = vmatprep.subr.mxu0 0.0
      %422 = vmatpush1.msra.mxu0 0.0
      %423 = vmatprep.subr.mxu0 0.0
      %424 = vmatpush1.msra.mxu0 0.0
      %425 = vmatprep.subr.mxu0 0.0
      %426 = vmatpush1.msra.mxu0 0.0
      %427 = vmatprep.subr.mxu0 0.0
      %428 = vmatpush1.msra.mxu0 0.0
      %429 = vmatprep.subr.mxu0 0.0
      %430 = vmatpush1.msra.mxu0 0.0
      %431 = vmatprep.subr.mxu0 0.0
      %432 = vmatpush1.msra.mxu0 0.0
      %433 = vmatprep.subr.mxu0 0.0
      %434 = vmatpush1.msra.mxu0 0.0
      %435 = vmatprep.subr.mxu0 0.0
      %436 = vmatpush1.msra.mxu0 0.0
      %437 = vmatprep.subr.mxu0 0.0
      %438 = vmatpush1.msra.mxu0 0.0
      %439 = vmatprep.subr.mxu0 0.0
      %440 = vmatpush1.msra.mxu0 0.0
      %441 = vmatprep.subr.mxu0 0.0
      %442 = vmatpush1.msra.mxu0 0.0
      %443 = vmatprep.subr.mxu0 0.0
      %444 = vmatpush1.msra.mxu0 0.0
      %445 = vmatprep.subr.mxu0 0.0
      %446 = vmatpush1.msra.mxu0 0.0
      %447 = vmatprep.subr.mxu0 0.0
      %448 = vmatpush1.msra.mxu0 0.0
      %449 = vmatprep.subr.mxu0 0.0
      %450 = vmatpush1.msra.mxu0 0.0
      %451 = vmatprep.subr.mxu0 0.0
      %452 = vmatpush1.msra.mxu0 0.0
      %453 = vmatprep.subr.mxu0 0.0
      %454 = vmatpush1.msra.mxu0 0.0
      %455 = vmatprep.subr.mxu0 0.0
      %456 = vmatpush1.msra.mxu0 0.0
      %457 = vmatprep.subr.mxu0 0.0
      %458 = vmatpush1.msra.mxu0 0.0
      %459 = vmatprep.subr.mxu0 0.0
      %460 = vmatpush1.msra.mxu0 0.0
      %461 = vmatprep.subr.mxu0 0.0
      %462 = vmatpush1.msra.mxu0 0.0
      %463 = vmatprep.subr.mxu0 0.0
      %464 = vmatpush1.msra.mxu0 0.0
      %465 = vmatprep.subr.mxu0 0.0
      %466 = vmatpush1.msra.mxu0 0.0
      %467 = vmatprep.subr.mxu0 0.0
      %468 = vmatpush1.msra.mxu0 0.0
      %469 = vmatprep.mubr.f32.mxu0 0.0
      %470 = vmatmul.mubr.f32.gmra.mrb[0].mxu0 %v382
      %v471 = vpop.f32.mrb[0].mxu0
      %v472 = vadd.f32 0.0, %v471
      %v473 = vpop.f32.mrb[0].mxu0
      %474 = vmatprep.mubr.f32.mxu0 0.0
      %475 = vmatmul.mubr.f32.gmra.mrb[0].mxu0 %v385
      %v476 = vpop.f32.mrb[0].mxu0
      %v477 = vadd.f32 0.0, %v476
      %v478 = vpop.f32.mrb[0].mxu0
      %479 = vmatprep.mubr.f32.mxu0 0.0
      %480 = vmatmul.mubr.f32.gmra.mrb[0].mxu0 %v388
      %v481 = vpop.f32.mrb[0].mxu0
      %v482 = vadd.f32 0.0, %v481
      %v483 = vpop.f32.mrb[0].mxu0
      %484 = vmatprep.mubr.f32.mxu0 0.0
      %485 = vmatmul.mubr.f32.gmra.mrb[0].mxu0 %v391
      %v486 = vpop.f32.mrb[0].mxu0
      %v487 = vadd.f32 0.0, %v486
      %v488 = vpop.f32.mrb[0].mxu0
      %489 = vmatprep.mubr.f32.mxu0 0.0
      %490 = vmatmul.mubr.f32.gmra.mrb[0].mxu0 %v394
      %v491 = vpop.f32.mrb[0].mxu0
      %v492 = vadd.f32 0.0, %v491
      %v493 = vpop.f32.mrb[0].mxu0
      %494 = vmatprep.mubr.f32.mxu0 0.0
      %495 = vmatmul.mubr.f32.gmra.mrb[0].mxu0 %v397
      %v496 = vpop.f32.mrb[0].mxu0
      %v497 = vadd.f32 0.0, %v496
      %v498 = vpop.f32.mrb[0].mxu0
      %499 = vmatprep.mubr.f32.mxu0 0.0
      %500 = vmatmul.mubr.f32.gmra.mrb[0].mxu0 %v400
      %v501 = vpop.f32.mrb[0].mxu0
      %v502 = vadd.f32 0.0, %v501
      %v503 = vpop.f32.mrb[0].mxu0
      %504 = vmatprep.mubr.f32.mxu0 0.0
      %505 = vmatmul.mubr.f32.gmra.mrb[0].mxu0 %v403
      %v506 = vpop.f32.mrb[0].mxu0
      %v507 = vadd.f32 0.0, %v506
      %v508 = vpop.f32.mrb[0].mxu0
      %509 = vdwg.mxu0
      %v510 = vadd.f32 %v373, %v472
      %v511 = vadd.f32 %v374, %v477
      %v512 = vadd.f32 %v375, %v482
      %v513 = vadd.f32 %v376, %v487
      %v514 = vadd.f32 %v377, %v492
      %v515 = vadd.f32 %v378, %v497
      %v516 = vadd.f32 %v379, %v502
      %v517 = vadd.f32 %v380, %v507
      %v518 = vsub.f32 %v510, %v210
      %v519 = vsub.f32 %v511, %v211
      %v520 = vsub.f32 %v512, %v212
      %v521 = vsub.f32 %v513, %v213
      %v522 = vsub.f32 %v514, %v214
      %v523 = vsub.f32 %v515, %v215
      %v524 = vsub.f32 %v516, %v216
      %v525 = vsub.f32 %v517, %v217
      %v526 = vld [vmem:[%s1] sm:$0xff]
      %v527 = vld [vmem:[%s1 + $0x8] sm:$0xff]
      %v528 = vld [vmem:[%s1 + $0x10] sm:$0xff]
      %v529 = vld [vmem:[%s1 + $0x18] sm:$0xff]
      %v530 = vld [vmem:[%s1 + $0x20] sm:$0xff]
      %v531 = vld [vmem:[%s1 + $0x28] sm:$0xff]
      %v532 = vld [vmem:[%s1 + $0x30] sm:$0xff]
      %v533 = vld [vmem:[%s1 + $0x38] sm:$0xff]
      %535 = vset.pattern.permute.xlu0 0
      %536 = vperm.xlu0 %535, %v526
      %v537 = vpop.permute.xlu0 %536
      %540 = vset.pattern.permute.xlu0 0
      %541 = vperm.xlu0 %540, %v527
      %v542 = vpop.permute.xlu0 %541
      %545 = vset.pattern.permute.xlu0 0
      %546 = vperm.xlu0 %545, %v528
      %v547 = vpop.permute.xlu0 %546
      %550 = vset.pattern.permute.xlu0 0
      %551 = vperm.xlu0 %550, %v529
      %v552 = vpop.permute.xlu0 %551
      %555 = vset.pattern.permute.xlu0 0
      %556 = vperm.xlu0 %555, %v530
      %v557 = vpop.permute.xlu0 %556
      %560 = vset.pattern.permute.xlu0 0
      %561 = vperm.xlu0 %560, %v531
      %v562 = vpop.permute.xlu0 %561
      %565 = vset.pattern.permute.xlu0 0
      %566 = vperm.xlu0 %565, %v532
      %v567 = vpop.permute.xlu0 %566
      %570 = vset.pattern.permute.xlu0 0
      %571 = vperm.xlu0 %570, %v533
      %v572 = vpop.permute.xlu0 %571
      %v574 = vadd.f32 %v518, %v537
      %v575 = vadd.f32 %v519, %v542
      %v576 = vadd.f32 %v520, %v547
      %v577 = vadd.f32 %v521, %v552
      %v578 = vadd.f32 %v522, %v557
      %v579 = vadd.f32 %v523, %v562
      %v580 = vadd.f32 %v524, %v567
      %v581 = vadd.f32 %v525, %v572
      %582 = vst.msk [vmem:[%s206] sm:$0xff] %vm227, %v574
      %583 = vst.msk [vmem:[%s206 + $0x8] sm:$0xff] %vm227, %v575
      %584 = vst.msk [vmem:[%s206 + $0x10] sm:$0xff] %vm227, %v576
      %585 = vst.msk [vmem:[%s206 + $0x18] sm:$0xff] %vm227, %v577
      %586 = vst.msk [vmem:[%s206 + $0x20] sm:$0xff] %vm227, %v578
      %587 = vst.msk [vmem:[%s206 + $0x28] sm:$0xff] %vm227, %v579
      %588 = vst.msk [vmem:[%s206 + $0x30] sm:$0xff] %vm227, %v580
      %589 = vst.msk [vmem:[%s206 + $0x38] sm:$0xff] %vm227, %v581
      %p590 = scmp.lt.s32.totalorder %s18, 1
      %s591 = scalar_select %p590, %s18, 1
      %p592 = scmp.lt.s32.totalorder %s19, 0
      %s593 = scalar_select %p592, %s19, 0
      %s594 = smul.addr %s593, 8
      %s595 = smul.addr %s591, 8
      %s596 = sadd.s32 %s594, %s595
      %s597 = smul.addr %s596, 8
      %s598 = scalar_lea.vmem %s3, %s597
      // Predicated region
      $region33: #{cheb_graph_conv.1} parent=31 // pred_check
        %p599 = pneg %p116
      $region34: #{cheb_graph_conv.1} parent=31 // pred_check_branch
        %601 = sbr.rel (%p599) target = $region36
      $region35: #{cheb_graph_conv.1} parent=31 // pred_region
        _
      $region36: #{cheb_graph_conv.1} parent=31 // pred_fallthru
        _
    $region32: #{cheb_graph_conv.1} parent=5 // pred_fallthru
      _
    %p602 = scmp.le.s32.totalorder 2, %s9
    // Predicated region
    $region37: #{cheb_graph_conv.1} parent=5 // pred_check
      %p603 = pneg %p602
    $region38: #{cheb_graph_conv.1} parent=5 // pred_check_branch
      %605 = sbr.rel (%p603) target = $region40
    $region39: #{cheb_graph_conv.1} parent=5 // pred_region
      %s606 = ssub.s32 %s9, 2
      // Predicated region
      $region41: #{cheb_graph_conv.1} parent=39 // pred_check
        %p607 = pneg %p122
      $region42: #{cheb_graph_conv.1} parent=39 // pred_check_branch
        %609 = sbr.rel (%p607) target = $region44
      $region43: #{cheb_graph_conv.1} parent=39 // pred_region
        %p610 = scmp.lt.s32.totalorder %s20, 1
        %s611 = scalar_select %p610, %s20, 1
        %p612 = scmp.lt.s32.totalorder %s21, 0
        %s613 = scalar_select %p612, %s21, 0
        %s614 = smul.addr %s613, 8
        %s615 = smul.addr %s611, 8
        %s616 = sadd.s32 %s614, %s615
        %s617 = smul.addr %s616, 8
        %s618 = scalar_lea.vmem %s3, %s617
      $region44: #{cheb_graph_conv.1} parent=39 // pred_fallthru
        _
    $region40: #{cheb_graph_conv.1} parent=5 // pred_fallthru
      _
  $region6: #{cheb_graph_conv.1} parent=0 // loop_footer
    %s13 = sadd.s32 1, %s9
  $region7: #{cheb_graph_conv.1} parent=0 // loop_footer_branch
    %8 = sbr.rel target = $region3
  $region8: #{cheb_graph_conv.1} parent=0 // loop_exit
    _

</llo_original>
